<compile_context>
chip_gen: v7x
topology: tpu7x:2x2x1
jax: 0.10.0
libtpu: 0.0.40
codegen_flags: <defaults>
</compile_context>

<pallas_src>
import functools

import jax
import jax.numpy as jnp
from jax.experimental import pallas as pl
from jax.experimental.pallas import tpu as pltpu


def _round_up(x, m):
    return ((x + m - 1) // m) * m


def _vmem_limit_bytes():
    """Per-generation VMEM budget with headroom (v5e/v6e: ~110 MiB, v7x: ~54 MiB)."""
    cap = 128 * 1024 * 1024
    try:
        cap = int(pltpu.get_tpu_info().vmem_capacity_bytes)
    except Exception:
        pass
    return max(32 * 1024 * 1024, min(int(cap * 0.85), 110 * 1024 * 1024))


# --------------------------------------------------------------------------- #
# Fused kernel: grid = (batch_tiles, num_layers).  The activation for one batch
# tile stays in a VMEM scratch across the whole layer axis; one layer's weights
# are streamed in per grid step (next layer prefetched behind the matmul).
# --------------------------------------------------------------------------- #
def _fused_mlp_kernel(x_ref, w_ref, b_ref, o_ref, act_ref):
    # x_ref: (TB, Dpad)       w_ref: (1, Dpad, Dpad)   b_ref: (1, 1, Dpad)
    # o_ref: (TB, Dpad)       act_ref: (TB, Dpad) f32 scratch (persists over l)
    l = pl.program_id(1)

    @pl.when(l == 0)
    def _init():
        act_ref[...] = x_ref[...]

    a = act_ref[...]
    w = w_ref[0]                                   # (Dpad, Dpad)
    if w.dtype != jnp.float32:                     # bf16 weight path: bf16 MXU inputs,
        a = a.astype(w.dtype)                      # f32 accumulation below.
    y = jnp.dot(a, w, preferred_element_type=jnp.float32)
    y = y + b_ref[0]                               # (1, Dpad) broadcast over batch
    act_ref[...] = jnp.maximum(y, 0.0)

    @pl.when(l == pl.num_programs(1) - 1)
    def _finalize():
        o_ref[...] = act_ref[...].astype(o_ref.dtype)


@functools.partial(jax.jit, static_argnames=("batch_tile",))
def _fused_forward(x_pad, w_stack, b_stack, *, batch_tile):
    b_pad, dpad = x_pad.shape
    num_layers = w_stack.shape[0]
    grid = (b_pad // batch_tile, num_layers)

    w_bytes = int(w_stack.size) * w_stack.dtype.itemsize
    b_bytes = int(b_stack.size) * b_stack.dtype.itemsize
    flops = 2 * b_pad * dpad * dpad * num_layers
    # weights counted once (advisory); activations in + out once.
    bytes_accessed = 4 * x_pad.size + w_bytes + b_bytes + 4 * b_pad * dpad

    return pl.pallas_call(
        _fused_mlp_kernel,
        out_shape=jax.ShapeDtypeStruct((b_pad, dpad), jnp.float32),
        grid=grid,
        in_specs=[
            # x tile: constant block index over l -> fetched once per batch tile.
            pl.BlockSpec((batch_tile, dpad), lambda i, l: (i, 0)),
            # one layer's weights / bias per grid step (streamed + prefetched).
            pl.BlockSpec((1, dpad, dpad), lambda i, l: (l, 0, 0)),
            pl.BlockSpec((1, 1, dpad), lambda i, l: (l, 0, 0)),
        ],
        out_specs=pl.BlockSpec((batch_tile, dpad), lambda i, l: (i, 0)),
        scratch_shapes=[pltpu.VMEM((batch_tile, dpad), jnp.float32)],
        compiler_params=pltpu.CompilerParams(
            dimension_semantics=("parallel", "arbitrary"),
            vmem_limit_bytes=_vmem_limit_bytes(),
        ),
        cost_estimate=pl.CostEstimate(
            flops=flops, transcendentals=0, bytes_accessed=bytes_accessed),
    )(x_pad, w_stack, b_stack)


# --------------------------------------------------------------------------- #
# Parameter setup (mirrors DeepNetwork.__init__) and packing into the padded
# stacked layout the kernel consumes.
# --------------------------------------------------------------------------- #
def init_deep_network_params(key, input_dim, linear_layers_units):
    """units = [input_dim] + linear_layers_units, one (W, b) per Linear layer.

    Weights are stored (in_features, out_features) so the kernel computes
    y = relu(x @ W + b) directly (PyTorch's (out, in) layout is transposed here).
    """
    units = [input_dim] + list(linear_layers_units)
    params = []
    for idx in range(len(units) - 1):
        d_in, d_out = units[idx], units[idx + 1]
        key, kw, kb = jax.random.split(key, 3)
        bound = 1.0 / jnp.sqrt(jnp.float32(d_in))
        w = jax.random.uniform(kw, (d_in, d_out), jnp.float32, -bound, bound)
        b = jax.random.uniform(kb, (d_out,), jnp.float32, -bound, bound)
        params.append((w, b))
    return params


def pack_params(params, input_dim, weight_dtype=jnp.float32):
    """Zero-pad every feature dim to a common 128-multiple and stack layers.

    weight_dtype=jnp.bfloat16 enables the fast MXU path (f32 accumulation kept).
    """
    dims = [input_dim] + [w.shape[1] for w, _ in params]
    dpad = max(_round_up(d, 128) for d in dims)
    num_layers = len(params)

    w_stack = jnp.zeros((num_layers, dpad, dpad), jnp.float32)
    b_stack = jnp.zeros((num_layers, 1, dpad), jnp.float32)
    for l, (w, b) in enumerate(params):
        w_stack = w_stack.at[l, : w.shape[0], : w.shape[1]].set(w)
        b_stack = b_stack.at[l, 0, : b.shape[0]].set(b)

    return {
        "w": w_stack.astype(weight_dtype),
        "b": b_stack,                      # bias + ReLU stay f32
        "dpad": dpad,
        "in_dim": input_dim,
        "out_dim": dims[-1],
        "num_layers": num_layers,
    }


def deep_network_forward(x, packed, *, batch_tile=256):
    """forward: x -> [Linear -> ReLU] * L, fused into one Pallas kernel."""
    B, d_in = x.shape
    dpad = packed["dpad"]

    b_pad8 = _round_up(B, 8)
    tb = min(batch_tile, b_pad8)                     # multiple of 8
    # Megacore (v7x): give the 'parallel' batch axis >=2 steps when B permits.
    if b_pad8 // tb < 2 and b_pad8 >= 16:
        tb = _round_up((b_pad8 + 1) // 2, 8)
    b_pad = _round_up(b_pad8, tb)

    x_pad = jnp.zeros((b_pad, dpad), jnp.float32).at[:B, :d_in].set(
        x.astype(jnp.float32))

    out_pad = _fused_forward(x_pad, packed["w"], packed["b"], batch_tile=tb)

    return out_pad[:B, : packed["out_dim"]]


def _reference_forward(x, params):
    for w, b in params:
        x = jnp.maximum(x @ w + b, 0.0)
    return x


if __name__ == "__main__":
    key = jax.random.PRNGKey(0)
    k_x, k_p = jax.random.split(key)

    batch = 16
    input_dim = 32
    linear_layers_units = [64, 32, 16]   # hidden/output units, as in the module

    x = jax.random.normal(k_x, (batch, input_dim), jnp.float32)
    params = init_deep_network_params(k_p, input_dim, linear_layers_units)
    packed = pack_params(params, input_dim)          # f32 weights (exact check)

    out = deep_network_forward(x, packed)
    out = jax.block_until_ready(out)

    # sanity check against pure-JAX reference
    ref = _reference_forward(x, params)
    assert out.shape == (batch, linear_layers_units[-1])
    assert jnp.allclose(out, ref, atol=1e-4, rtol=1e-4)

    print("KERNEL_OK")
</pallas_src>

<mosaic_0001>
module attributes {stable_mosaic.version = 11 : i64} {
  func.func @_fused_mlp_kernel(%arg0: i32, %arg1: i32, %arg2: memref<8x128xf32, #tpu.memory_space<vmem>>, %arg3: memref<1x128x128xf32, #tpu.memory_space<vmem>>, %arg4: memref<1x1x128xf32, #tpu.memory_space<vmem>>, %arg5: memref<8x128xf32, #tpu.memory_space<vmem>>, %arg6: memref<8x128xf32, #tpu.memory_space<vmem>>) attributes {dimension_semantics = [#tpu.dimension_semantics<parallel>, #tpu.dimension_semantics<arbitrary>], iteration_bounds = array<i64: 2, 3>, scalar_prefetch = 0 : i64, scratch_operands = 1 : i64, tpu.core_type = #tpu.core_type<tc>, window_params = [{transform_indices = @transform_0, window_bounds = array<i64: 8, 128>}, {transform_indices = @transform_1, window_bounds = array<i64: 1, 128, 128>}, {transform_indices = @transform_2, window_bounds = array<i64: 1, 1, 128>}, {transform_indices = @transform_3, window_bounds = array<i64: 8, 128>}]} {
    %c0_i32 = arith.constant 0 : i32
    %0 = arith.cmpi eq, %arg1, %c0_i32 : i32
    %1 = arith.extui %0 : i1 to i32
    %c0_i32_0 = arith.constant 0 : i32
    %2 = arith.cmpi ne, %1, %c0_i32_0 : i32
    scf.if %2 {
      %c0_12 = arith.constant 0 : index
      %c0_13 = arith.constant 0 : index
      %17 = vector.load %arg2[%c0_12, %c0_13] : memref<8x128xf32, #tpu.memory_space<vmem>>, vector<8x128xf32>
      %c0_14 = arith.constant 0 : index
      %c0_15 = arith.constant 0 : index
      %18 = vector.load %arg6[%c0_14, %c0_15] : memref<8x128xf32, #tpu.memory_space<vmem>>, vector<8x128xf32>
      tpu.vector_store %arg6[%c0_14, %c0_15], %17 {strides = array<i32>} : memref<8x128xf32, #tpu.memory_space<vmem>>, vector<8x128xf32>,
    } else {
    }
    %c0 = arith.constant 0 : index
    %c0_1 = arith.constant 0 : index
    %3 = vector.load %arg6[%c0, %c0_1] : memref<8x128xf32, #tpu.memory_space<vmem>>, vector<8x128xf32>
    %c0_2 = arith.constant 0 : index
    %c0_3 = arith.constant 0 : index
    %c0_4 = arith.constant 0 : index
    %4 = vector.load %arg3[%c0_2, %c0_3, %c0_4] : memref<1x128x128xf32, #tpu.memory_space<vmem>>, vector<1x128x128xf32>
    %5 = vector.shape_cast %4 : vector<1x128x128xf32> to vector<128x128xf32>
    %cst = arith.constant dense<0.000000e+00> : vector<8x128xf32>
    %6 = tpu.matmul %3, %5, %cst {dimension_numbers = #tpu.dot_dimension_numbers<[1], [0], [0], [1], [0, 0, 1, 1], [], []>} : vector<8x128xf32>, vector<128x128xf32>, vector<8x128xf32> -> vector<8x128xf32>
    %c0_5 = arith.constant 0 : index
    %c0_6 = arith.constant 0 : index
    %c0_7 = arith.constant 0 : index
    %7 = vector.load %arg4[%c0_5, %c0_6, %c0_7] : memref<1x1x128xf32, #tpu.memory_space<vmem>>, vector<1x1x128xf32>
    %8 = vector.shape_cast %7 : vector<1x1x128xf32> to vector<1x128xf32>
    %9 = vector.broadcast %8 : vector<1x128xf32> to vector<8x128xf32>
    %10 = arith.addf %6, %9 : vector<8x128xf32>
    %cst_8 = arith.constant 0.000000e+00 : f32
    %11 = vector.broadcast %cst_8 : f32 to vector<8x128xf32>
    %12 = arith.maximumf %10, %11 : vector<8x128xf32>
    %c0_9 = arith.constant 0 : index
    %c0_10 = arith.constant 0 : index
    %13 = vector.load %arg6[%c0_9, %c0_10] : memref<8x128xf32, #tpu.memory_space<vmem>>, vector<8x128xf32>
    tpu.vector_store %arg6[%c0_9, %c0_10], %12 {strides = array<i32>} : memref<8x128xf32, #tpu.memory_space<vmem>>, vector<8x128xf32>,
    %c2_i32 = arith.constant 2 : i32
    %14 = arith.cmpi eq, %arg1, %c2_i32 : i32
    %15 = arith.extui %14 : i1 to i32
    %c0_i32_11 = arith.constant 0 : i32
    %16 = arith.cmpi ne, %15, %c0_i32_11 : i32
    scf.if %16 {
      %c0_12 = arith.constant 0 : index
      %c0_13 = arith.constant 0 : index
      %17 = vector.load %arg6[%c0_12, %c0_13] : memref<8x128xf32, #tpu.memory_space<vmem>>, vector<8x128xf32>
      %c0_14 = arith.constant 0 : index
      %c0_15 = arith.constant 0 : index
      %18 = vector.load %arg5[%c0_14, %c0_15] : memref<8x128xf32, #tpu.memory_space<vmem>>, vector<8x128xf32>
      tpu.vector_store %arg5[%c0_14, %c0_15], %17 {strides = array<i32>} : memref<8x128xf32, #tpu.memory_space<vmem>>, vector<8x128xf32>,
    } else {
    }
    return
  }
  func.func @transform_0(%arg0: i32, %arg1: i32) -> (i32, i32) {
    %c0_i32 = arith.constant 0 : i32
    %c0_i32_0 = arith.constant 0 : i32
    return %arg0, %c0_i32 : i32, i32
  }
  func.func @transform_1(%arg0: i32, %arg1: i32) -> (i32, i32, i32) {
    %c0_i32 = arith.constant 0 : i32
    %c0_i32_0 = arith.constant 0 : i32
    %c0_i32_1 = arith.constant 0 : i32
    return %arg1, %c0_i32, %c0_i32_0 : i32, i32, i32
  }
  func.func @transform_2(%arg0: i32, %arg1: i32) -> (i32, i32, i32) {
    %c0_i32 = arith.constant 0 : i32
    %c0_i32_0 = arith.constant 0 : i32
    %c0_i32_1 = arith.constant 0 : i32
    return %arg1, %c0_i32, %c0_i32_0 : i32, i32, i32
  }
  func.func @transform_3(%arg0: i32, %arg1: i32) -> (i32, i32) {
    %c0_i32 = arith.constant 0 : i32
    %c0_i32_0 = arith.constant 0 : i32
    return %arg0, %c0_i32 : i32, i32
  }
}

</mosaic_0001>

<llo_original>
// kernel: _fused_forward.1
$region0: #{_fused_forward.1}
  #allocation0 [shape = 'u32[]', space=smem, size = 0x4, offset = 0x4, fixed_abs, tag = 'smem constant byte address 0x4 - core index']
  #allocation1 [shape = 'u32[144,128]{1,0:T(1,128)}', space=vmem, size = 0x12000, scoped, tag = 'internal scratch']
  #allocation2 [shape = 'f32[8,128]{1,0:T(8,128)}', space=vmem, size = 0x1000, scoped, tag = 'scratch operand']
  %s0 = inlined_call_operand.hbm [shape: f32[16,128], index: 0, kind: input, shape index: {}]
  %s1 = inlined_call_operand.hbm [shape: f32[3,128,128], index: 1, kind: input, shape index: {}]
  %s2 = inlined_call_operand.hbm [shape: f32[3,1,128], index: 2, kind: input, shape index: {}]
  %s3 = inlined_call_operand.hbm [shape: f32[16,128], index: 3, kind: output, shape index: {}]
  %s4 = sld [smem:[#allocation0]]
  $region65: #{_fused_forward.1} parent=0
    _
  %s6 = ssub.s32 1, %s4
  %s7 = scalar_select 0, %s6, %s4
  $region1: #{_fused_forward.1} parent=0
    #allocation3 [shape = 'u8[8192]{0}', space=vmem, size = 0x2000, scoped, tag = 'input window, operand 0']
    #allocation4 [shape = 's32[2]{0}', space=sflag, size = 0x8, scoped, tag = 'scoped memory for _fused_forward.1']
    #allocation5 [shape = 's32[2]{0}', space=sflag, size = 0x8, scoped, tag = 'scoped memory for _fused_forward.1']
    #allocation6 [shape = 'u8[131072]{0}', space=vmem, size = 0x20000, scoped, tag = 'input window, operand 1']
    #allocation7 [shape = 's32[2]{0}', space=sflag, size = 0x8, scoped, tag = 'scoped memory for _fused_forward.1']
    #allocation8 [shape = 'u8[1024]{0}', space=vmem, size = 0x400, scoped, tag = 'input window, operand 2']
    #allocation9 [shape = 'u8[8192]{0}', space=vmem, size = 0x2000, scoped, tag = 'output window, operand 0']
    %8 = vsyncpa [#allocation4], 0
    %s9 = scalar_lea.sflag [#allocation4], 1
    %10 = vsyncpa %s9, 0
    %11 = vsyncpa [#allocation7], 0
    %s12 = scalar_lea.sflag [#allocation7], 1
    %13 = vsyncpa %s12, 0
    %14 = vsyncpa [#allocation5], 0
    %s15 = scalar_lea.sflag [#allocation5], 1
    %16 = vsyncpa %s15, 0
    loop: start=0, step=1, limit=8
    $region2: #{_fused_forward.1} parent=1 // loop_pre_header
      _
    $region3: #{_fused_forward.1} parent=1 // loop_header
      %s18 = sphi 0, %s22
      %p19 = scmp.ge.s32.totalorder %s18, 8
      %s25 = sphi 0, %s37
      %s26 = sphi 0, %s33
      %s27 = sphi 0, %s25
      %s28 = sphi 0, %s26
      %s29 = sphi 0, %s27
      %s30 = sphi 0, %s28
      %s40 = sphi 0, %s42
      %s43 = sphi 0, %s40
      %s44 = sphi 0, %s43
      %s60 = sphi 0, %s44
      %s66 = sphi 0, %s68
      %s69 = sphi 0, %s66
      %s70 = sphi 0, %s69
      %s86 = sphi 0, %s70
      %s92 = sphi 0, %s94
      %s95 = sphi 0, %s92
      %s96 = sphi 0, %s95
      %s112 = sphi 0, %s96
      %s118 = sphi 0, %s120
      %s121 = sphi 0, %s118
      %s122 = sphi 0, %s121
      %s138 = sphi 0, %s122
    $region4: #{_fused_forward.1} parent=1 // loop_header_branch
      %21 = sbr.rel (%p19) target = $region8
    $region5: #{_fused_forward.1} parent=1 // loop_body
      %s23 = ssub.s32 %s18, 1
      %s24 = ssub.s32 %s18, 2
      %s31 = sadd.s32 1, %s26
      %p32 = scmp.ge.s32.totalorder %s31, 3
      %s33 = scalar_select %p32, 0, %s31
      %s34 = sadd.s32 1, %s25
      %s35 = scalar_select %p32, %s34, %s25
      %p36 = scmp.ge.s32.totalorder %s35, 2
      %s37 = scalar_select %p36, 0, %s35
      %s38 = ssub.s32 %s25, %s37
      %p39 = scmp.eq.s32.totalorder %s38, 0
      %s41 = sadd.s32 %s40, 1
      %s42 = scalar_select %p39, %s40, %s41
      %p45 = pneg %p39
      %p46 = scmp.eq.s32.totalorder %s18, 5
      %p47 = por %p45, %p46
      %p48 = scmp.ne.s32.totalorder %s40, %s43
      %p49 = scmp.eq.s32.totalorder %s18, 0
      %p50 = por %p48, %p49
      %p51 = scmp.ne.s32.totalorder %s40, %s43
      %p52 = scmp.eq.s32.totalorder %s23, 5
      %p53 = por %p51, %p52
      %p54 = scmp.ne.s32.totalorder %s43, %s44
      %p55 = scmp.eq.s32.totalorder %s23, 0
      %p56 = por %p54, %p55
      %p57 = scmp.ne.s32.totalorder %s43, %s44
      %p58 = scmp.eq.s32.totalorder %s24, 5
      %p59 = por %p57, %p58
      %p61 = scmp.ne.s32.totalorder %s44, %s60
      %p62 = scmp.eq.s32.totalorder %s24, 0
      %p63 = por %p61, %p62
      %s64 = ssub.s32 %s26, %s33
      %p65 = scmp.eq.s32.totalorder %s64, 0
      %s67 = sadd.s32 %s66, 1
      %s68 = scalar_select %p65, %s66, %s67
      %p71 = pneg %p65
      %p72 = scmp.eq.s32.totalorder %s18, 5
      %p73 = por %p71, %p72
      %p74 = scmp.ne.s32.totalorder %s66, %s69
      %p75 = scmp.eq.s32.totalorder %s18, 0
      %p76 = por %p74, %p75
      %p77 = scmp.ne.s32.totalorder %s66, %s69
      %p78 = scmp.eq.s32.totalorder %s23, 5
      %p79 = por %p77, %p78
      %p80 = scmp.ne.s32.totalorder %s69, %s70
      %p81 = scmp.eq.s32.totalorder %s23, 0
      %p82 = por %p80, %p81
      %p83 = scmp.ne.s32.totalorder %s69, %s70
      %p84 = scmp.eq.s32.totalorder %s24, 5
      %p85 = por %p83, %p84
      %p87 = scmp.ne.s32.totalorder %s70, %s86
      %p88 = scmp.eq.s32.totalorder %s24, 0
      %p89 = por %p87, %p88
      %s90 = ssub.s32 %s26, %s33
      %p91 = scmp.eq.s32.totalorder %s90, 0
      %s93 = sadd.s32 %s92, 1
      %s94 = scalar_select %p91, %s92, %s93
      %p97 = pneg %p91
      %p98 = scmp.eq.s32.totalorder %s18, 5
      %p99 = por %p97, %p98
      %p100 = scmp.ne.s32.totalorder %s92, %s95
      %p101 = scmp.eq.s32.totalorder %s18, 0
      %p102 = por %p100, %p101
      %p103 = scmp.ne.s32.totalorder %s92, %s95
      %p104 = scmp.eq.s32.totalorder %s23, 5
      %p105 = por %p103, %p104
      %p106 = scmp.ne.s32.totalorder %s95, %s96
      %p107 = scmp.eq.s32.totalorder %s23, 0
      %p108 = por %p106, %p107
      %p109 = scmp.ne.s32.totalorder %s95, %s96
      %p110 = scmp.eq.s32.totalorder %s24, 5
      %p111 = por %p109, %p110
      %p113 = scmp.ne.s32.totalorder %s96, %s112
      %p114 = scmp.eq.s32.totalorder %s24, 0
      %p115 = por %p113, %p114
      %s116 = ssub.s32 %s25, %s37
      %p117 = scmp.eq.s32.totalorder %s116, 0
      %s119 = sadd.s32 %s118, 1
      %s120 = scalar_select %p117, %s118, %s119
      %p123 = pneg %p117
      %p124 = scmp.eq.s32.totalorder %s18, 5
      %p125 = por %p123, %p124
      %p126 = scmp.ne.s32.totalorder %s118, %s121
      %p127 = scmp.eq.s32.totalorder %s18, 0
      %p128 = por %p126, %p127
      %p129 = scmp.ne.s32.totalorder %s118, %s121
      %p130 = scmp.eq.s32.totalorder %s23, 5
      %p131 = por %p129, %p130
      %p132 = scmp.ne.s32.totalorder %s121, %s122
      %p133 = scmp.eq.s32.totalorder %s23, 0
      %p134 = por %p132, %p133
      %p135 = scmp.ne.s32.totalorder %s121, %s122
      %p136 = scmp.eq.s32.totalorder %s24, 5
      %p137 = por %p135, %p136
      %p139 = scmp.ne.s32.totalorder %s122, %s138
      %p140 = scmp.eq.s32.totalorder %s24, 0
      %p141 = por %p139, %p140
      %p142 = scmp.le.s32.totalorder 1, %s18
      %p143 = scmp.lt.s32.totalorder %s18, 7
      %p144 = pnand %p142, %p143
      %p145 = pneg %p144
      // Predicated region
      $region9: #{_fused_forward.1} parent=5 // pred_check
        _
      $region10: #{_fused_forward.1} parent=5 // pred_check_branch
        %147 = sbr.rel (%p144) target = $region12
      $region11: #{_fused_forward.1} parent=5 // pred_region
        %s148 = ssub.s32 %s18, 1
      $region12: #{_fused_forward.1} parent=5 // pred_fallthru
        _
      %p149 = scmp.lt.s32.totalorder %s18, 6
      // Predicated region
      $region13: #{_fused_forward.1} parent=5 // pred_check
        %p150 = pneg %p149
      $region14: #{_fused_forward.1} parent=5 // pred_check_branch
        %152 = sbr.rel (%p150) target = $region16
      $region15: #{_fused_forward.1} parent=5 // pred_region
        // Predicated region
        $region17: #{_fused_forward.1} parent=15 // pred_check
          %p153 = pneg %p50
        $region18: #{_fused_forward.1} parent=15 // pred_check_branch
          %155 = sbr.rel (%p153) target = $region20
        $region19: #{_fused_forward.1} parent=15 // pred_region
          %s156 = sand.u32 %s40, 1
          %s157 = scalar_lea.sflag [#allocation4], %s156
          %s158 = sand.u32 %s40, 1
          %s159 = smul.addr %s158, 8
          %s160 = scalar_lea.vmem [#allocation3], %s159
          %s162 = ssub.s32 128, 128
          %163 = vsyncadd %s157, %s162
          %s164 = smul.addr %s25, 128
          %s165 = scalar_lea.hbm %s0, %s164
          %s167 = sshll.u32 %s160, 4
          %s168 = int_to_ptr.vmem [resolvable:$true] %s167
          %170 = dma.hbm_to_vmem [thread:$0]  %s165, 128, %s168, %s157
        $region20: #{_fused_forward.1} parent=15 // pred_fallthru
          _
        // Predicated region
        $region21: #{_fused_forward.1} parent=15 // pred_check
          %p171 = pneg %p76
        $region22: #{_fused_forward.1} parent=15 // pred_check_branch
          %173 = sbr.rel (%p171) target = $region24
        $region23: #{_fused_forward.1} parent=15 // pred_region
          %s174 = sand.u32 %s18, 1
          %s175 = scalar_lea.sflag [#allocation7], %s174
          %s176 = sand.u32 %s66, 1
          %s177 = smul.addr %s176, 128
          %s178 = scalar_lea.vmem [#allocation6], %s177
          %s180 = ssub.s32 2048, 2048
          %181 = vsyncadd %s175, %s180
          %s182 = smul.addr %s26, 16
          %s183 = smul.addr %s182, 128
          %s184 = scalar_lea.hbm %s1, %s183
          %s185 = sshll.u32 %s178, 4
          %s186 = int_to_ptr.vmem [resolvable:$true] %s185
          %191 = dma.hbm_to_vmem [thread:$0]  %s184, 2048, %s186, %s175, 128, 128, 8
        $region24: #{_fused_forward.1} parent=15 // pred_fallthru
          _
        // Predicated region
        $region25: #{_fused_forward.1} parent=15 // pred_check
          %p192 = pneg %p102
        $region26: #{_fused_forward.1} parent=15 // pred_check_branch
          %194 = sbr.rel (%p192) target = $region28
        $region27: #{_fused_forward.1} parent=15 // pred_region
          %s195 = sand.u32 %s18, 1
          %s196 = scalar_lea.sflag [#allocation7], %s195
          %s197 = sand.u32 %s92, 1
          %s198 = scalar_lea.vmem [#allocation8], %s197
          %s200 = ssub.s32 16, 16
          %201 = vsyncadd %s196, %s200
          %s202 = smul.addr %s26, 16
          %s203 = scalar_lea.hbm %s2, %s202
          %s205 = sshll.u32 %s198, 4
          %s206 = int_to_ptr.vmem [resolvable:$true] %s205
          %208 = dma.hbm_to_vmem [thread:$0]  %s203, 16, %s206, %s196
        $region28: #{_fused_forward.1} parent=15 // pred_fallthru
          _
      $region16: #{_fused_forward.1} parent=5 // pred_fallthru
        _
      %p209 = scmp.le.s32.totalorder 1, %s18
      %p210 = scmp.lt.s32.totalorder %s18, 7
      %p211 = pnand %p209, %p210
      %p212 = pneg %p211
      // Predicated region
      $region29: #{_fused_forward.1} parent=5 // pred_check
        _
      $region30: #{_fused_forward.1} parent=5 // pred_check_branch
        %214 = sbr.rel (%p211) target = $region32
      $region31: #{_fused_forward.1} parent=5 // pred_region
        %s215 = ssub.s32 %s18, 1
        %s216 = sand.u32 %s43, 1
        %s217 = scalar_lea.sflag [#allocation4], %s216
        %s218 = sand.u32 %s43, 1
        %s219 = smul.addr %s218, 8
        %s220 = scalar_lea.vmem [#allocation3], %s219
        // Predicated region
        $region33: #{_fused_forward.1} parent=31 // pred_check
          %p221 = pneg %p56
        $region34: #{_fused_forward.1} parent=31 // pred_check_branch
          %223 = sbr.rel (%p221) target = $region36
        $region35: #{_fused_forward.1} parent=31 // pred_region
          %224 = dma.done %s217, 128
        $region36: #{_fused_forward.1} parent=31 // pred_fallthru
          _
        %s225 = sand.u32 %s23, 1
        %s226 = scalar_lea.sflag [#allocation7], %s225
        %s227 = sand.u32 %s69, 1
        %s228 = smul.addr %s227, 128
        %s229 = scalar_lea.vmem [#allocation6], %s228
        // Predicated region
        $region37: #{_fused_forward.1} parent=31 // pred_check
          %p230 = pneg %p82
        $region38: #{_fused_forward.1} parent=31 // pred_check_branch
          %232 = sbr.rel (%p230) target = $region40
        $region39: #{_fused_forward.1} parent=31 // pred_region
          %233 = dma.done %s226, 2048
        $region40: #{_fused_forward.1} parent=31 // pred_fallthru
          _
        %s234 = sand.u32 %s23, 1
        %s235 = scalar_lea.sflag [#allocation7], %s234
        %s236 = sand.u32 %s95, 1
        %s237 = scalar_lea.vmem [#allocation8], %s236
        // Predicated region
        $region41: #{_fused_forward.1} parent=31 // pred_check
          %p238 = pneg %p108
        $region42: #{_fused_forward.1} parent=31 // pred_check_branch
          %240 = sbr.rel (%p238) target = $region44
        $region43: #{_fused_forward.1} parent=31 // pred_region
          %241 = dma.done %s235, 16
        $region44: #{_fused_forward.1} parent=31 // pred_fallthru
          _
        %s242 = sand.u32 %s43, 1
        %s243 = scalar_lea.sflag [#allocation4], %s242
        %s244 = sand.u32 %s43, 1
        %s245 = smul.addr %s244, 8
        %s246 = scalar_lea.vmem [#allocation3], %s245
        %p247 = pneg %p56
        %p248 = pneg %p53
        %s249 = sand.u32 %s23, 1
        %s250 = scalar_lea.sflag [#allocation7], %s249
        %s251 = sand.u32 %s69, 1
        %s252 = smul.addr %s251, 128
        %s253 = scalar_lea.vmem [#allocation6], %s252
        %p254 = pneg %p82
        %p255 = pneg %p79
        %s256 = sand.u32 %s23, 1
        %s257 = scalar_lea.sflag [#allocation7], %s256
        %s258 = sand.u32 %s95, 1
        %s259 = scalar_lea.vmem [#allocation8], %s258
        %p260 = pneg %p108
        %p261 = pneg %p105
        %p262 = pneg %p134
        %p263 = pneg %p131
        %s264 = sand.u32 %s121, 1
        %s265 = scalar_lea.sflag [#allocation5], %s264
        %s266 = sand.u32 %s121, 1
        %s267 = smul.addr %s266, 8
        %s268 = scalar_lea.vmem [#allocation9], %s267
        %p269 = scmp.eq.s32.totalorder %s28, 0
        // Predicated region
        $region45: #{_fused_forward.1} parent=31 // pred_check
          %p270 = pneg %p269
        $region46: #{_fused_forward.1} parent=31 // pred_check_branch
          %272 = sbr.rel (%p270) target = $region48
        $region47: #{_fused_forward.1} parent=31 // pred_region
          %v273 = vld [vmem:[%s220] sm:$0xff]
          %274 = vst [vmem:[#allocation2] sm:$0xff] %v273
        $region48: #{_fused_forward.1} parent=31 // pred_fallthru
          _
        %v275 = vld [vmem:[#allocation2] sm:$0xff]
        %v276 = vld [vmem:[%s229] sm:$0xff]
        %v277 = vld [vmem:[%s229 + $0x8] sm:$0xff]
        %v278 = vld [vmem:[%s229 + $0x10] sm:$0xff]
        %v279 = vld [vmem:[%s229 + $0x18] sm:$0xff]
        %v280 = vld [vmem:[%s229 + $0x20] sm:$0xff]
        %v281 = vld [vmem:[%s229 + $0x28] sm:$0xff]
        %v282 = vld [vmem:[%s229 + $0x30] sm:$0xff]
        %v283 = vld [vmem:[%s229 + $0x38] sm:$0xff]
        %v284 = vld [vmem:[%s229 + $0x40] sm:$0xff]
        %v285 = vld [vmem:[%s229 + $0x48] sm:$0xff]
        %v286 = vld [vmem:[%s229 + $0x50] sm:$0xff]
        %v287 = vld [vmem:[%s229 + $0x58] sm:$0xff]
        %v288 = vld [vmem:[%s229 + $0x60] sm:$0xff]
        %v289 = vld [vmem:[%s229 + $0x68] sm:$0xff]
        %v290 = vld [vmem:[%s229 + $0x70] sm:$0xff]
        %v291 = vld [vmem:[%s229 + $0x78] sm:$0xff]
        %v292 = vld [vmem:[%s237] sm:$0x1]
        %v294 = vlaneseq
        %v295 = vshrl.u32 %v294, 7
        %v296 = vsub.s32 0, %v295
        %v297 = vrot.slane %v292, %v296
        %299 = vmatprep.subr.mxu0 0.0
        %300 = vmatpush1.msra.mxu0 %v276
        %301 = vmatprep.subr.mxu0 0.0
        %302 = vmatpush1.msra.mxu0 %v277
        %303 = vmatprep.subr.mxu0 0.0
        %304 = vmatpush1.msra.mxu0 %v278
        %305 = vmatprep.subr.mxu0 0.0
        %306 = vmatpush1.msra.mxu0 %v279
        %307 = vmatprep.subr.mxu0 0.0
        %308 = vmatpush1.msra.mxu0 %v280
        %309 = vmatprep.subr.mxu0 0.0
        %310 = vmatpush1.msra.mxu0 %v281
        %311 = vmatprep.subr.mxu0 0.0
        %312 = vmatpush1.msra.mxu0 %v282
        %313 = vmatprep.subr.mxu0 0.0
        %314 = vmatpush1.msra.mxu0 %v283
        %315 = vmatprep.subr.mxu0 0.0
        %316 = vmatpush1.msra.mxu0 %v284
        %317 = vmatprep.subr.mxu0 0.0
        %318 = vmatpush1.msra.mxu0 %v285
        %319 = vmatprep.subr.mxu0 0.0
        %320 = vmatpush1.msra.mxu0 %v286
        %321 = vmatprep.subr.mxu0 0.0
        %322 = vmatpush1.msra.mxu0 %v287
        %323 = vmatprep.subr.mxu0 0.0
        %324 = vmatpush1.msra.mxu0 %v288
        %325 = vmatprep.subr.mxu0 0.0
        %326 = vmatpush1.msra.mxu0 %v289
        %327 = vmatprep.subr.mxu0 0.0
        %328 = vmatpush1.msra.mxu0 %v290
        %329 = vmatprep.subr.mxu0 0.0
        %330 = vmatpush1.msra.mxu0 %v291
        %331 = vmatprep.subr.mxu0 0.0
        %332 = vmatpush1.msra.mxu0 0.0
        %333 = vmatprep.subr.mxu0 0.0
        %334 = vmatpush1.msra.mxu0 0.0
        %335 = vmatprep.subr.mxu0 0.0
        %336 = vmatpush1.msra.mxu0 0.0
        %337 = vmatprep.subr.mxu0 0.0
        %338 = vmatpush1.msra.mxu0 0.0
        %339 = vmatprep.subr.mxu0 0.0
        %340 = vmatpush1.msra.mxu0 0.0
        %341 = vmatprep.subr.mxu0 0.0
        %342 = vmatpush1.msra.mxu0 0.0
        %343 = vmatprep.subr.mxu0 0.0
        %344 = vmatpush1.msra.mxu0 0.0
        %345 = vmatprep.subr.mxu0 0.0
        %346 = vmatpush1.msra.mxu0 0.0
        %347 = vmatprep.subr.mxu0 0.0
        %348 = vmatpush1.msra.mxu0 0.0
        %349 = vmatprep.subr.mxu0 0.0
        %350 = vmatpush1.msra.mxu0 0.0
        %351 = vmatprep.subr.mxu0 0.0
        %352 = vmatpush1.msra.mxu0 0.0
        %353 = vmatprep.subr.mxu0 0.0
        %354 = vmatpush1.msra.mxu0 0.0
        %355 = vmatprep.subr.mxu0 0.0
        %356 = vmatpush1.msra.mxu0 0.0
        %357 = vmatprep.subr.mxu0 0.0
        %358 = vmatpush1.msra.mxu0 0.0
        %359 = vmatprep.subr.mxu0 0.0
        %360 = vmatpush1.msra.mxu0 0.0
        %361 = vmatprep.subr.mxu0 0.0
        %362 = vmatpush1.msra.mxu0 0.0
        %363 = vmatprep.mubr.f32.mxu0 0.0
        %364 = vmatmul.mubr.f32.gmra.mrb[0].mxu0 %v275
        %v365 = vpop.f32.mrb[0].mxu0
        %v366 = vadd.f32 %v297, %v365
        %v367 = vpop.f32.mrb[0].mxu0
        %368 = vdwg.mxu0
        %v369 = vmax.f32 %v366, 0.0
        %370 = vst [vmem:[#allocation2] sm:$0xff] %v369
        %p371 = scmp.eq.s32.totalorder %s28, 2
        // Predicated region
        $region49: #{_fused_forward.1} parent=31 // pred_check
          %p372 = pneg %p371
        $region50: #{_fused_forward.1} parent=31 // pred_check_branch
          %374 = sbr.rel (%p372) target = $region52
        $region51: #{_fused_forward.1} parent=31 // pred_region
          %v375 = vld [vmem:[#allocation2] sm:$0xff]
          %376 = vst [vmem:[%s268] sm:$0xff] %v375
        $region52: #{_fused_forward.1} parent=31 // pred_fallthru
          _
        %s377 = sand.u32 %s121, 1
        %s378 = scalar_lea.sflag [#allocation5], %s377
        %s379 = sand.u32 %s121, 1
        %s380 = smul.addr %s379, 8
        %s381 = scalar_lea.vmem [#allocation9], %s380
        // Predicated region
        $region53: #{_fused_forward.1} parent=31 // pred_check
          %p382 = pneg %p131
        $region54: #{_fused_forward.1} parent=31 // pred_check_branch
          %384 = sbr.rel (%p382) target = $region56
        $region55: #{_fused_forward.1} parent=31 // pred_region
          %s386 = ssub.s32 128, 128
          %387 = vsyncadd %s378, %s386
          %s388 = smul.addr %s27, 128
          %s389 = scalar_lea.hbm %s3, %s388
          %s391 = sshll.u32 %s381, 4
          %s392 = int_to_ptr.vmem [resolvable:$true] %s391
          %394 = dma.vmem_to_hbm [thread:$0]  %s392, 128, %s389, %s378
        $region56: #{_fused_forward.1} parent=31 // pred_fallthru
          _
      $region32: #{_fused_forward.1} parent=5 // pred_fallthru
        _
      %p395 = scmp.le.s32.totalorder 2, %s18
      // Predicated region
      $region57: #{_fused_forward.1} parent=5 // pred_check
        %p396 = pneg %p395
      $region58: #{_fused_forward.1} parent=5 // pred_check_branch
        %398 = sbr.rel (%p396) target = $region60
      $region59: #{_fused_forward.1} parent=5 // pred_region
        %s399 = ssub.s32 %s18, 2
        // Predicated region
        $region61: #{_fused_forward.1} parent=59 // pred_check
          %p400 = pneg %p137
        $region62: #{_fused_forward.1} parent=59 // pred_check_branch
          %402 = sbr.rel (%p400) target = $region64
        $region63: #{_fused_forward.1} parent=59 // pred_region
          %s403 = sand.u32 %s122, 1
          %s404 = scalar_lea.sflag [#allocation5], %s403
          %s405 = sand.u32 %s122, 1
          %s406 = smul.addr %s405, 8
          %s407 = scalar_lea.vmem [#allocation9], %s406
          %408 = dma.done %s404, 128
        $region64: #{_fused_forward.1} parent=59 // pred_fallthru
          _
      $region60: #{_fused_forward.1} parent=5 // pred_fallthru
        _
    $region6: #{_fused_forward.1} parent=1 // loop_footer
      %s22 = sadd.s32 1, %s18
    $region7: #{_fused_forward.1} parent=1 // loop_footer_branch
      %17 = sbr.rel target = $region3
    $region8: #{_fused_forward.1} parent=1 // loop_exit
      _
    %409 = vsyncpa [#allocation4], 1
    %s410 = scalar_lea.sflag [#allocation4], 1
    %411 = vsyncpa %s410, 1
    %412 = vsyncpa [#allocation7], 1
    %s413 = scalar_lea.sflag [#allocation7], 1
    %414 = vsyncpa %s413, 1
    %415 = vsyncpa [#allocation5], 1
    %s416 = scalar_lea.sflag [#allocation5], 1
    %417 = vsyncpa %s416, 1

</llo_original>
